<compile_context>
chip_gen: v7x
topology: tpu7x:2x2x1
jax: 0.10.0
libtpu: 0.0.40
codegen_flags: <defaults>
</compile_context>

<pallas_src>
import functools

import jax
import jax.numpy as jnp
from jax import lax
from jax.experimental import pallas as pl
from jax.experimental.pallas import tpu as pltpu

ALPHA = 0.2   # SpanEmo default: loss = (1 - alpha) * BCE + alpha * corr_loss
LANES = 128   # lane-padding target; 128 fills the v5e MXU and gives unmasked
              # vst on all generations (256 would fill v6e/v7x MXU tiles).


def spanemo_kernel(ch_ref, w1t_ref, b1_ref, w2_ref, b2_ref, tgt_ref, seg_ref,
                   loss_ref, logits_ref, ypred_ref, *, batch, num_classes):
    B, C = batch, num_classes
    CB = C * B
    CBp = ch_ref.shape[0]                               # padded lane count

    # ---- FFN layer 1 on the MXU (trans_b form) ------------------------------
    # ch keeps its natural (CBp, H) layout (H minor); contracting both minor
    # dims yields h^T = (ch @ w1)^T directly -> no wrapper-side minor-dim
    # transpose and no in-kernel relayout.  bf16 x bf16 -> f32 accumulation.
    h = jnp.tanh(
        lax.dot_general(w1t_ref[...], ch_ref[...],
                        dimension_numbers=(((1,), (1,)), ((), ())),
                        preferred_element_type=jnp.float32)
        + b1_ref[...])                                  # (H, CBp) f32

    # ---- FFN layer 2: exact f32 sublane reduce ------------------------------
    b2 = b2_ref[0, 0]                                   # SMEM scalar
    logits = jnp.sum(h * w2_ref[...], axis=0, keepdims=True) + b2   # (1, CBp)

    # ---- elementwise loss terms (f32) ----------------------------------------
    t = tgt_ref[...]                                    # (1, CBp) in {0, 1}
    bce = (jnp.maximum(logits, 0.0) - logits * t
           + jnp.log1p(jnp.exp(-jnp.abs(logits))))      # (1, CBp)

    # NOTE: the corr loss depends on the EUP approx reciprocal here (~1e-3-scale
    # after exp, ALPHA-weighted); y_pred below uses the exact logits > 0 test.
    sig = pl.reciprocal(1.0 + jnp.exp(-logits), approx=True)
    neg = (t == 0.0).astype(jnp.float32)
    pos = (t == 1.0).astype(jnp.float32)
    e_p = jnp.exp(sig) * neg
    e_q = jnp.exp(-sig) * pos

    # ---- ALL per-batch reductions via ONE small f32 MXU matmul --------------
    # seg[l, b] = 1 iff lane l = c*B + b with c < C, b < B.  Padded lanes and
    # padded batch columns are all-zero, so zero-padding never biases the loss.
    row = lax.broadcasted_iota(jnp.int32, (8, CBp), 0)
    stack = (jnp.where(row == 0, neg, 0.0)
             + jnp.where(row == 1, pos, 0.0)
             + jnp.where(row == 2, e_p, 0.0)
             + jnp.where(row == 3, e_q, 0.0)
             + jnp.where(row == 4, bce, 0.0))           # (8, CBp) f32
    per_b = jnp.dot(stack, seg_ref[...],
                    preferred_element_type=jnp.float32)  # (8, LANES) f32

    n_neg = per_b[0:1, :]
    n_pos = per_b[1:2, :]
    s_p = per_b[2:3, :]
    s_q = per_b[3:4, :]
    bce_b = per_b[4:5, :]

    # exp_diff loss per batch:
    #   mean_{p in neg, q in pos} exp(sig_p - sig_q)
    # = (sum_neg exp(sig)) * (sum_pos exp(-sig)) / (n_neg * n_pos), 0 if empty.
    denom = n_neg * n_pos                               # (1, LANES)
    cl_b = jnp.where(denom > 0.0,
                     s_p * s_q / jnp.maximum(denom, 1.0), 0.0)
    cl = jnp.sum(cl_b, axis=1, keepdims=True) * (1.0 / B)          # (1, 1)
    bce_loss = jnp.sum(bce_b, axis=1, keepdims=True) * (1.0 / CB)  # (1, 1)

    # ---- outputs (lane-dense rows -> unmasked stores) ------------------------
    loss_ref[...] = (1.0 - ALPHA) * bce_loss + ALPHA * cl
    logits_ref[...] = logits
    # compute_pred: sigmoid(x) > 0.5  <=>  x > 0  (exact, no approx involved)
    ypred_ref[...] = (logits > 0.0).astype(jnp.float32)


def spanemo_forward(input_ids, emb, label_idxs, w1, b1, w2, b2, targets,
                    num_classes, tokens_per_class):
    """SpanEmo.forward equivalent -> (loss, logits, y_pred)."""
    B = input_ids.shape[0]
    H = emb.shape[1]
    C, T = num_classes, tokens_per_class
    CB = C * B
    CBp = max(LANES, -(-CB // LANES) * LANES)           # pad lanes to 128-multiple

    # TODO(synk): full XLMRobertaModel backbone not reproduced; deterministic
    # embedding lookup stands in for the encoder's last_hidden_state.
    last_hidden_state = emb[input_ids]                  # (B, S, H) f32

    # Label-token gather + per-class mean pool fused with the (B,C)->(C,B)
    # leading-dim permutation in one einsum; H stays the minor dim, so there is
    # no standalone minor-dim relayout pass and no T-padded tensor in VMEM.
    gathered = last_hidden_state[:, label_idxs, :]      # (B, C*T, H)
    ch_cb = jnp.einsum('bcth->cbh',
                       gathered.reshape(B, C, T, H)) * (1.0 / T)   # (C, B, H)
    ch2 = ch_cb.reshape(CB, H).astype(jnp.bfloat16)     # lane = H (minor unchanged)
    ch_pad = jnp.pad(ch2, ((0, CBp - CB), (0, 0)))      # (CBp, H) bf16, zero rows

    w1_t = w1.T.astype(jnp.bfloat16)                    # (H, H) tiny static weight prep
    b1_c = b1.reshape(H, 1).astype(jnp.float32)
    w2_c = w2.reshape(H, 1).astype(jnp.float32)
    b2_s = b2.reshape(1, 1).astype(jnp.float32)

    tgt = jnp.round(targets.astype(jnp.float32))        # targets.float().round()
    tgt_row = jnp.pad(tgt.T.reshape(1, CB), ((0, 0), (0, CBp - CB)))   # (1, CBp)

    # Constant 0/1 segment matrix: seg[l, b] = 1 iff l = c*B + b, c < C, b < B.
    li = jnp.arange(CBp, dtype=jnp.int32)[:, None]
    bi = jnp.arange(LANES, dtype=jnp.int32)[None, :]
    seg = ((li < CB) & ((li % B) == bi)).astype(jnp.float32)           # (CBp, LANES)

    vmem = pl.BlockSpec(memory_space=pltpu.MemorySpace.VMEM)
    smem = pl.BlockSpec(memory_space=pltpu.MemorySpace.SMEM)
    out_shapes = (
        jax.ShapeDtypeStruct((1, 1), jnp.float32),      # loss
        jax.ShapeDtypeStruct((1, CBp), jnp.float32),    # logits (class-major row)
        jax.ShapeDtypeStruct((1, CBp), jnp.float32),    # y_pred (class-major row)
    )
    cost = pl.CostEstimate(
        flops=2 * H * H * CBp + 2 * 8 * CBp * LANES + 12 * H * CBp,
        transcendentals=H * CBp + 4 * CBp,
        bytes_accessed=(ch_pad.size * 2 + w1_t.size * 2 + seg.size * 4
                        + tgt_row.size * 4 + (2 * CBp + 1 + 2 * H + 1) * 4),
    )
    loss, logits_row, ypred_row = pl.pallas_call(
        functools.partial(spanemo_kernel, batch=B, num_classes=C),
        out_shape=out_shapes,
        in_specs=[vmem, vmem, vmem, vmem, smem, vmem, vmem],
        out_specs=(vmem, vmem, vmem),
        cost_estimate=cost,
    )(ch_pad, w1_t, b1_c, w2_c, b2_s, tgt_row, seg)

    logits = logits_row[:, :CB].reshape(C, B).T         # (B, C)
    y_pred = ypred_row[:, :CB].reshape(C, B).T          # (B, C)
    return loss[0, 0], logits, y_pred


def spanemo_reference(input_ids, emb, label_idxs, w1, b1, w2, b2, targets,
                      num_classes, tokens_per_class):
    """Pure-JAX f32 reference mirroring the PyTorch forward semantics."""
    C, T = num_classes, tokens_per_class
    last_hidden = emb[input_ids]
    g = last_hidden[:, label_idxs, :]
    B, _, H = g.shape
    ch = g.reshape(B, C, T, H).mean(axis=2)             # (B, C, H)
    h = jnp.tanh(ch @ w1 + b1)                          # dropout = identity (eval)
    logits = h @ w2 + b2                                # (B, C)
    t = jnp.round(targets.astype(jnp.float32))
    bce = jnp.mean(jnp.maximum(logits, 0.0) - logits * t
                   + jnp.log1p(jnp.exp(-jnp.abs(logits))))
    sig = jax.nn.sigmoid(logits)
    neg = (t == 0.0).astype(jnp.float32)
    pos = (t == 1.0).astype(jnp.float32)
    n_neg = neg.sum(axis=1)
    n_pos = pos.sum(axis=1)
    s_p = (jnp.exp(sig) * neg).sum(axis=1)
    s_q = (jnp.exp(-sig) * pos).sum(axis=1)
    denom = n_neg * n_pos
    cl_i = jnp.where(denom > 0.0, s_p * s_q / jnp.maximum(denom, 1.0), 0.0)
    cl = cl_i.mean()
    loss = (1.0 - ALPHA) * bce + ALPHA * cl
    y_pred = (sig > 0.5).astype(jnp.float32)
    return loss, logits, y_pred


if __name__ == "__main__":
    key = jax.random.PRNGKey(0)
    B, S, H, V = 2, 24, 32, 50          # batch, seq_len, hidden, vocab
    C, T = 8, 2                         # num emotion classes, label tokens per class
    ks = jax.random.split(key, 7)

    emb = jax.random.normal(ks[0], (V, H), jnp.float32) * 0.02
    input_ids = jax.random.randint(ks[1], (B, S), 0, V)
    w1 = jax.random.normal(ks[2], (H, H), jnp.float32) * 0.1
    b1 = jax.random.normal(ks[3], (H,), jnp.float32) * 0.1
    w2 = jax.random.normal(ks[4], (H,), jnp.float32) * 0.1
    b2 = jax.random.normal(ks[5], (), jnp.float32) * 0.1
    targets = (jax.random.uniform(ks[6], (B, C)) > 0.5).astype(jnp.float32)
    # label-name tokens occupy the first C*T positions of the prompt
    label_idxs = jnp.arange(C * T, dtype=jnp.int32)

    loss, logits, y_pred = spanemo_forward(
        input_ids, emb, label_idxs, w1, b1, w2, b2, targets, C, T)
    jax.block_until_ready((loss, logits, y_pred))

    ref_loss, ref_logits, _ = spanemo_reference(
        input_ids, emb, label_idxs, w1, b1, w2, b2, targets, C, T)

    assert logits.shape == (B, C) and y_pred.shape == (B, C)
    # bf16 MXU operands (f32 accumulation) + approx EUP reciprocal: errors at
    # these magnitudes are O(1e-4), comfortably within the tolerances below.
    assert jnp.allclose(loss, ref_loss, rtol=5e-3, atol=2e-3)
    assert jnp.allclose(logits, ref_logits, rtol=5e-3, atol=2e-3)

    print("KERNEL_OK")
</pallas_src>

<mosaic_0001>
module attributes {stable_mosaic.version = 11 : i64} {
  func.func @spanemo_kernel(%arg0: memref<128x32xbf16, #tpu.memory_space<vmem>>, %arg1: memref<32x32xbf16, #tpu.memory_space<vmem>>, %arg2: memref<32x1xf32, #tpu.memory_space<vmem>>, %arg3: memref<32x1xf32, #tpu.memory_space<vmem>>, %arg4: memref<1x1xf32, #tpu.memory_space<smem>>, %arg5: memref<1x128xf32, #tpu.memory_space<vmem>>, %arg6: memref<128x128xf32, #tpu.memory_space<vmem>>, %arg7: memref<1x1xf32, #tpu.memory_space<vmem>>, %arg8: memref<1x128xf32, #tpu.memory_space<vmem>>, %arg9: memref<1x128xf32, #tpu.memory_space<vmem>>) attributes {dimension_semantics = [], scalar_prefetch = 0 : i64, scratch_operands = 0 : i64, tpu.core_type = #tpu.core_type<tc>} {
    %c0 = arith.constant 0 : index
    %c0_0 = arith.constant 0 : index
    %0 = vector.load %arg1[%c0, %c0_0] : memref<32x32xbf16, #tpu.memory_space<vmem>>, vector<32x32xbf16>
    %c0_1 = arith.constant 0 : index
    %c0_2 = arith.constant 0 : index
    %1 = vector.load %arg0[%c0_1, %c0_2] : memref<128x32xbf16, #tpu.memory_space<vmem>>, vector<128x32xbf16>
    %cst = arith.constant dense<0.000000e+00> : vector<32x128xf32>
    %2 = tpu.matmul %0, %1, %cst {dimension_numbers = #tpu.dot_dimension_numbers<[1], [1], [0], [0], [0, 0, 1, 0], [], []>} : vector<32x32xbf16>, vector<128x32xbf16>, vector<32x128xf32> -> vector<32x128xf32>
    %c0_3 = arith.constant 0 : index
    %c0_4 = arith.constant 0 : index
    %3 = vector.load %arg2[%c0_3, %c0_4] : memref<32x1xf32, #tpu.memory_space<vmem>>, vector<32x1xf32>
    %4 = vector.broadcast %3 : vector<32x1xf32> to vector<32x128xf32>
    %5 = arith.addf %2, %4 : vector<32x128xf32>
    %6 = math.tanh %5 : vector<32x128xf32>
    %c0_5 = arith.constant 0 : index
    %c0_6 = arith.constant 0 : index
    %7 = memref.load %arg4[%c0_5, %c0_6] : memref<1x1xf32, #tpu.memory_space<smem>>
    %c0_7 = arith.constant 0 : index
    %c0_8 = arith.constant 0 : index
    %8 = vector.load %arg3[%c0_7, %c0_8] : memref<32x1xf32, #tpu.memory_space<vmem>>, vector<32x1xf32>
    %9 = vector.broadcast %8 : vector<32x1xf32> to vector<32x128xf32>
    %10 = arith.mulf %6, %9 : vector<32x128xf32>
    %cst_9 = arith.constant dense<0.000000e+00> : vector<128xf32>
    %11 = vector.multi_reduction <add>, %10, %cst_9 [0] : vector<32x128xf32> to vector<128xf32>
    %12 = vector.shape_cast %11 : vector<128xf32> to vector<1x128xf32>
    %13 = vector.broadcast %7 : f32 to vector<1x128xf32>
    %14 = arith.addf %12, %13 : vector<1x128xf32>
    %c0_10 = arith.constant 0 : index
    %c0_11 = arith.constant 0 : index
    %15 = vector.load %arg5[%c0_10, %c0_11] : memref<1x128xf32, #tpu.memory_space<vmem>>, vector<1x128xf32>
    %cst_12 = arith.constant 0.000000e+00 : f32
    %16 = vector.broadcast %cst_12 : f32 to vector<1x128xf32>
    %17 = arith.maximumf %14, %16 : vector<1x128xf32>
    %18 = arith.mulf %14, %15 : vector<1x128xf32>
    %19 = arith.subf %17, %18 : vector<1x128xf32>
    %20 = math.absf %14 : vector<1x128xf32>
    %cst_13 = arith.constant 0.000000e+00 : f32
    %21 = vector.broadcast %cst_13 : f32 to vector<1x128xf32>
    %22 = arith.subf %21, %20 : vector<1x128xf32>
    %23 = math.exp %22 : vector<1x128xf32>
    %24 = math.log1p %23 : vector<1x128xf32>
    %25 = arith.addf %19, %24 : vector<1x128xf32>
    %cst_14 = arith.constant 0.000000e+00 : f32
    %26 = vector.broadcast %cst_14 : f32 to vector<1x128xf32>
    %27 = arith.subf %26, %14 : vector<1x128xf32>
    %28 = math.exp %27 : vector<1x128xf32>
    %cst_15 = arith.constant 1.000000e+00 : f32
    %29 = vector.broadcast %cst_15 : f32 to vector<1x128xf32>
    %30 = arith.addf %29, %28 : vector<1x128xf32>
    %31 = tpu.reciprocal %30 {approx = true} : vector<1x128xf32> -> vector<1x128xf32>
    %cst_16 = arith.constant 0.000000e+00 : f32
    %32 = vector.broadcast %cst_16 : f32 to vector<1x128xf32>
    %33 = arith.cmpf oeq, %15, %32 : vector<1x128xf32>
    %34 = arith.extui %33 : vector<1x128xi1> to vector<1x128xi32>
    %35 = arith.sitofp %34 : vector<1x128xi32> to vector<1x128xf32>
    %cst_17 = arith.constant 1.000000e+00 : f32
    %36 = vector.broadcast %cst_17 : f32 to vector<1x128xf32>
    %37 = arith.cmpf oeq, %15, %36 : vector<1x128xf32>
    %38 = arith.extui %37 : vector<1x128xi1> to vector<1x128xi32>
    %39 = arith.sitofp %38 : vector<1x128xi32> to vector<1x128xf32>
    %40 = math.exp %31 : vector<1x128xf32>
    %41 = arith.mulf %40, %35 : vector<1x128xf32>
    %cst_18 = arith.constant 0.000000e+00 : f32
    %42 = vector.broadcast %cst_18 : f32 to vector<1x128xf32>
    %43 = arith.subf %42, %31 : vector<1x128xf32>
    %44 = math.exp %43 : vector<1x128xf32>
    %45 = arith.mulf %44, %39 : vector<1x128xf32>
    %46 = tpu.iota {dimensions = array<i32: 0>} : vector<8x128xi32>
    %c0_i32 = arith.constant 0 : i32
    %47 = vector.broadcast %c0_i32 : i32 to vector<8x128xi32>
    %48 = arith.cmpi eq, %46, %47 : vector<8x128xi32>
    %cst_19 = arith.constant 0.000000e+00 : f32
    %49 = vector.shape_cast %35 : vector<1x128xf32> to vector<1x128xf32>
    %50 = vector.broadcast %49 : vector<1x128xf32> to vector<8x128xf32>
    %51 = vector.broadcast %cst_19 : f32 to vector<8x128xf32>
    %52 = arith.select %48, %50, %51 : vector<8x128xi1>, vector<8x128xf32>
    %c1_i32 = arith.constant 1 : i32
    %53 = vector.broadcast %c1_i32 : i32 to vector<8x128xi32>
    %54 = arith.cmpi eq, %46, %53 : vector<8x128xi32>
    %cst_20 = arith.constant 0.000000e+00 : f32
    %55 = vector.shape_cast %39 : vector<1x128xf32> to vector<1x128xf32>
    %56 = vector.broadcast %55 : vector<1x128xf32> to vector<8x128xf32>
    %57 = vector.broadcast %cst_20 : f32 to vector<8x128xf32>
    %58 = arith.select %54, %56, %57 : vector<8x128xi1>, vector<8x128xf32>
    %59 = arith.addf %52, %58 : vector<8x128xf32>
    %c2_i32 = arith.constant 2 : i32
    %60 = vector.broadcast %c2_i32 : i32 to vector<8x128xi32>
    %61 = arith.cmpi eq, %46, %60 : vector<8x128xi32>
    %cst_21 = arith.constant 0.000000e+00 : f32
    %62 = vector.shape_cast %41 : vector<1x128xf32> to vector<1x128xf32>
    %63 = vector.broadcast %62 : vector<1x128xf32> to vector<8x128xf32>
    %64 = vector.broadcast %cst_21 : f32 to vector<8x128xf32>
    %65 = arith.select %61, %63, %64 : vector<8x128xi1>, vector<8x128xf32>
    %66 = arith.addf %59, %65 : vector<8x128xf32>
    %c3_i32 = arith.constant 3 : i32
    %67 = vector.broadcast %c3_i32 : i32 to vector<8x128xi32>
    %68 = arith.cmpi eq, %46, %67 : vector<8x128xi32>
    %cst_22 = arith.constant 0.000000e+00 : f32
    %69 = vector.shape_cast %45 : vector<1x128xf32> to vector<1x128xf32>
    %70 = vector.broadcast %69 : vector<1x128xf32> to vector<8x128xf32>
    %71 = vector.broadcast %cst_22 : f32 to vector<8x128xf32>
    %72 = arith.select %68, %70, %71 : vector<8x128xi1>, vector<8x128xf32>
    %73 = arith.addf %66, %72 : vector<8x128xf32>
    %c4_i32 = arith.constant 4 : i32
    %74 = vector.broadcast %c4_i32 : i32 to vector<8x128xi32>
    %75 = arith.cmpi eq, %46, %74 : vector<8x128xi32>
    %cst_23 = arith.constant 0.000000e+00 : f32
    %76 = vector.shape_cast %25 : vector<1x128xf32> to vector<1x128xf32>
    %77 = vector.broadcast %76 : vector<1x128xf32> to vector<8x128xf32>
    %78 = vector.broadcast %cst_23 : f32 to vector<8x128xf32>
    %79 = arith.select %75, %77, %78 : vector<8x128xi1>, vector<8x128xf32>
    %80 = arith.addf %73, %79 : vector<8x128xf32>
    %c0_24 = arith.constant 0 : index
    %c0_25 = arith.constant 0 : index
    %81 = vector.load %arg6[%c0_24, %c0_25] : memref<128x128xf32, #tpu.memory_space<vmem>>, vector<128x128xf32>
    %cst_26 = arith.constant dense<0.000000e+00> : vector<8x128xf32>
    %82 = tpu.matmul %80, %81, %cst_26 {dimension_numbers = #tpu.dot_dimension_numbers<[1], [0], [0], [1], [0, 0, 1, 1], [], []>} : vector<8x128xf32>, vector<128x128xf32>, vector<8x128xf32> -> vector<8x128xf32>
    %83 = vector.extract_strided_slice %82 {offsets = [0, 0], sizes = [1, 128], strides = [1, 1]} : vector<8x128xf32> to vector<1x128xf32>
    %84 = vector.extract_strided_slice %82 {offsets = [1, 0], sizes = [1, 128], strides = [1, 1]} : vector<8x128xf32> to vector<1x128xf32>
    %85 = vector.extract_strided_slice %82 {offsets = [2, 0], sizes = [1, 128], strides = [1, 1]} : vector<8x128xf32> to vector<1x128xf32>
    %86 = vector.extract_strided_slice %82 {offsets = [3, 0], sizes = [1, 128], strides = [1, 1]} : vector<8x128xf32> to vector<1x128xf32>
    %87 = vector.extract_strided_slice %82 {offsets = [4, 0], sizes = [1, 128], strides = [1, 1]} : vector<8x128xf32> to vector<1x128xf32>
    %88 = arith.mulf %83, %84 : vector<1x128xf32>
    %cst_27 = arith.constant 0.000000e+00 : f32
    %89 = vector.broadcast %cst_27 : f32 to vector<1x128xf32>
    %90 = arith.cmpf ogt, %88, %89 : vector<1x128xf32>
    %91 = arith.mulf %85, %86 : vector<1x128xf32>
    %cst_28 = arith.constant 1.000000e+00 : f32
    %92 = vector.broadcast %cst_28 : f32 to vector<1x128xf32>
    %93 = arith.maximumf %88, %92 : vector<1x128xf32>
    %94 = arith.divf %91, %93 : vector<1x128xf32>
    %cst_29 = arith.constant 0.000000e+00 : f32
    %95 = vector.broadcast %cst_29 : f32 to vector<1x128xf32>
    %96 = arith.select %90, %94, %95 : vector<1x128xi1>, vector<1x128xf32>
    %cst_30 = arith.constant dense<0.000000e+00> : vector<1xf32>
    %97 = vector.multi_reduction <add>, %96, %cst_30 [1] : vector<1x128xf32> to vector<1xf32>
    %98 = vector.shape_cast %97 : vector<1xf32> to vector<1x1xf32>
    %cst_31 = arith.constant 5.000000e-01 : f32
    %99 = vector.broadcast %cst_31 : f32 to vector<1x1xf32>
    %100 = arith.mulf %98, %99 : vector<1x1xf32>
    %cst_32 = arith.constant dense<0.000000e+00> : vector<1xf32>
    %101 = vector.multi_reduction <add>, %87, %cst_32 [1] : vector<1x128xf32> to vector<1xf32>
    %102 = vector.shape_cast %101 : vector<1xf32> to vector<1x1xf32>
    %cst_33 = arith.constant 6.250000e-02 : f32
    %103 = vector.broadcast %cst_33 : f32 to vector<1x1xf32>
    %104 = arith.mulf %102, %103 : vector<1x1xf32>
    %cst_34 = arith.constant 8.000000e-01 : f32
    %105 = vector.broadcast %cst_34 : f32 to vector<1x1xf32>
    %106 = arith.mulf %105, %104 : vector<1x1xf32>
    %cst_35 = arith.constant 2.000000e-01 : f32
    %107 = vector.broadcast %cst_35 : f32 to vector<1x1xf32>
    %108 = arith.mulf %107, %100 : vector<1x1xf32>
    %109 = arith.addf %106, %108 : vector<1x1xf32>
    %c0_36 = arith.constant 0 : index
    %c0_37 = arith.constant 0 : index
    %110 = vector.load %arg7[%c0_36, %c0_37] : memref<1x1xf32, #tpu.memory_space<vmem>>, vector<1x1xf32>
    tpu.vector_store %arg7[%c0_36, %c0_37], %109 {strides = array<i32>} : memref<1x1xf32, #tpu.memory_space<vmem>>, vector<1x1xf32>,
    %c0_38 = arith.constant 0 : index
    %c0_39 = arith.constant 0 : index
    %111 = vector.load %arg8[%c0_38, %c0_39] : memref<1x128xf32, #tpu.memory_space<vmem>>, vector<1x128xf32>
    tpu.vector_store %arg8[%c0_38, %c0_39], %14 {strides = array<i32>} : memref<1x128xf32, #tpu.memory_space<vmem>>, vector<1x128xf32>,
    %cst_40 = arith.constant 0.000000e+00 : f32
    %112 = vector.broadcast %cst_40 : f32 to vector<1x128xf32>
    %113 = arith.cmpf ogt, %14, %112 : vector<1x128xf32>
    %114 = arith.extui %113 : vector<1x128xi1> to vector<1x128xi32>
    %115 = arith.sitofp %114 : vector<1x128xi32> to vector<1x128xf32>
    %c0_41 = arith.constant 0 : index
    %c0_42 = arith.constant 0 : index
    %116 = vector.load %arg9[%c0_41, %c0_42] : memref<1x128xf32, #tpu.memory_space<vmem>>, vector<1x128xf32>
    tpu.vector_store %arg9[%c0_41, %c0_42], %115 {strides = array<i32>} : memref<1x128xf32, #tpu.memory_space<vmem>>, vector<1x128xf32>,
    return
  }
}

</mosaic_0001>

<llo_original>
// kernel: tpu_custom_call.1
$region0: #{tpu_custom_call.1}
  #allocation0 [shape = 'u32[]', space=smem, size = 0x4, offset = 0x4, fixed_abs, tag = 'smem constant byte address 0x4 - core index']
  #allocation1 [shape = 'u32[144,128]{1,0:T(1,128)}', space=vmem, size = 0x12000, scoped, tag = 'internal scratch']
  #allocation2 [shape = 'f32[1,1]{1,0:T(1,128)S(6)}', space=smem, size = 0x200, scoped, tag = 'scoped memory for tpu_custom_call.1']
  %s0 = inlined_call_operand.vmem [shape: bf16[128,32], index: 0, kind: input, shape index: {}]
  %s1 = inlined_call_operand.vmem [shape: bf16[32,32], index: 1, kind: input, shape index: {}]
  %s2 = inlined_call_operand.vmem [shape: f32[32,1], index: 2, kind: input, shape index: {}]
  %s3 = inlined_call_operand.vmem [shape: f32[32,1], index: 3, kind: input, shape index: {}]
  %s4 = inlined_call_operand.<no memory space> [shape: f32[1,1], index: 4, kind: input, shape index: {}]
  %s5 = inlined_call_operand.vmem [shape: f32[1,128], index: 5, kind: input, shape index: {}]
  %s6 = inlined_call_operand.vmem [shape: f32[128,128], index: 6, kind: input, shape index: {}]
  %s7 = inlined_call_operand.hbm [shape: f32[1,1], index: 7, kind: output, shape index: {0}]
  %s8 = inlined_call_operand.hbm [shape: f32[1,128], index: 8, kind: output, shape index: {1}]
  %s9 = inlined_call_operand.hbm [shape: f32[1,128], index: 9, kind: output, shape index: {2}]
  %10 = xla_tuple %s7, %s8, %s9
  %s11 = sld [smem:[#allocation0]]
  $region54: #{tpu_custom_call.1} parent=0
    _
  %s13 = ssub.s32 1, %s11
  %s14 = scalar_select 0, %s13, %s11
  %15 = sst [smem:[#allocation2]] %s4
  $region1: #{tpu_custom_call.1} parent=0
    #allocation3 [shape = 'u8[512]{0}', space=vmem, size = 0x400, scoped, tag = 'output window, operand 0, single buffered']
    #allocation4 [shape = 's32[1]{0}', space=sflag, size = 0x4, scoped, tag = 'scoped memory for tpu_custom_call.1']
    #allocation5 [shape = 'u8[512]{0}', space=vmem, size = 0x400, scoped, tag = 'output window, operand 1, single buffered']
    #allocation6 [shape = 's32[1]{0}', space=sflag, size = 0x4, scoped, tag = 'scoped memory for tpu_custom_call.1']
    #allocation7 [shape = 'u8[512]{0}', space=vmem, size = 0x400, scoped, tag = 'output window, operand 2, single buffered']
    %16 = vsyncpa [#allocation4], 0
    %17 = vsyncpa [#allocation6], 0
    // Predicated region
    $region2: #{tpu_custom_call.1} parent=1 // pred_check
      _
    $region3: #{tpu_custom_call.1} parent=1 // pred_check_branch
      %19 = sbr.rel (0) target = $region5
    $region4: #{tpu_custom_call.1} parent=1 // pred_region
      _
    $region5: #{tpu_custom_call.1} parent=1 // pred_fallthru
      _
    // Predicated region
    $region6: #{tpu_custom_call.1} parent=1 // pred_check
      _
    $region7: #{tpu_custom_call.1} parent=1 // pred_check_branch
      %21 = sbr.rel (0) target = $region9
    $region8: #{tpu_custom_call.1} parent=1 // pred_region
      _
    $region9: #{tpu_custom_call.1} parent=1 // pred_fallthru
      _
    // Predicated region
    $region10: #{tpu_custom_call.1} parent=1 // pred_check
      _
    $region11: #{tpu_custom_call.1} parent=1 // pred_check_branch
      %23 = sbr.rel (0) target = $region13
    $region12: #{tpu_custom_call.1} parent=1 // pred_region
      _
    $region13: #{tpu_custom_call.1} parent=1 // pred_fallthru
      _
    // Predicated region
    $region14: #{tpu_custom_call.1} parent=1 // pred_check
      _
    $region15: #{tpu_custom_call.1} parent=1 // pred_check_branch
      %25 = sbr.rel (0) target = $region17
    $region16: #{tpu_custom_call.1} parent=1 // pred_region
      _
    $region17: #{tpu_custom_call.1} parent=1 // pred_fallthru
      _
    // Predicated region
    $region18: #{tpu_custom_call.1} parent=1 // pred_check
      _
    $region19: #{tpu_custom_call.1} parent=1 // pred_check_branch
      %27 = sbr.rel (0) target = $region21
    $region20: #{tpu_custom_call.1} parent=1 // pred_region
      _
    $region21: #{tpu_custom_call.1} parent=1 // pred_fallthru
      _
    // Predicated region
    $region22: #{tpu_custom_call.1} parent=1 // pred_check
      _
    $region23: #{tpu_custom_call.1} parent=1 // pred_check_branch
      %29 = sbr.rel (0) target = $region25
    $region24: #{tpu_custom_call.1} parent=1 // pred_region
      _
    $region25: #{tpu_custom_call.1} parent=1 // pred_fallthru
      _
    // Predicated region
    $region26: #{tpu_custom_call.1} parent=1 // pred_check
      _
    $region27: #{tpu_custom_call.1} parent=1 // pred_check_branch
      %31 = sbr.rel (0) target = $region29
    $region28: #{tpu_custom_call.1} parent=1 // pred_region
      _
    $region29: #{tpu_custom_call.1} parent=1 // pred_fallthru
      _
    %v33 = vld [vmem:[%s1] sm:$0xf]
    %v34 = vld [vmem:[%s1 + $0x4] sm:$0xf]
    %v35 = vld [vmem:[%s1 + $0x8] sm:$0xf]
    %v36 = vld [vmem:[%s1 + $0xc] sm:$0xf]
    %v37 = vld [vmem:[%s0] sm:$0xf]
    %v38 = vld [vmem:[%s0 + $0x4] sm:$0xf]
    %v39 = vld [vmem:[%s0 + $0x8] sm:$0xf]
    %v40 = vld [vmem:[%s0 + $0xc] sm:$0xf]
    %v41 = vld [vmem:[%s0 + $0x10] sm:$0xf]
    %v42 = vld [vmem:[%s0 + $0x14] sm:$0xf]
    %v43 = vld [vmem:[%s0 + $0x18] sm:$0xf]
    %v44 = vld [vmem:[%s0 + $0x1c] sm:$0xf]
    %v45 = vld [vmem:[%s0 + $0x20] sm:$0xf]
    %v46 = vld [vmem:[%s0 + $0x24] sm:$0xf]
    %v47 = vld [vmem:[%s0 + $0x28] sm:$0xf]
    %v48 = vld [vmem:[%s0 + $0x2c] sm:$0xf]
    %v49 = vld [vmem:[%s0 + $0x30] sm:$0xf]
    %v50 = vld [vmem:[%s0 + $0x34] sm:$0xf]
    %v51 = vld [vmem:[%s0 + $0x38] sm:$0xf]
    %v52 = vld [vmem:[%s0 + $0x3c] sm:$0xf]
    %v53 = vld [vmem:[%s2] sm:$0xff]
    %v54 = vld [vmem:[%s2 + $0x8] sm:$0xff]
    %v55 = vld [vmem:[%s2 + $0x10] sm:$0xff]
    %v56 = vld [vmem:[%s2 + $0x18] sm:$0xff]
    %58 = vset.pattern.permute.xlu0 0
    %59 = vperm.xlu0 %58, %v53
    %v60 = vpop.permute.xlu0 %59
    %63 = vset.pattern.permute.xlu0 0
    %64 = vperm.xlu0 %63, %v54
    %v65 = vpop.permute.xlu0 %64
    %68 = vset.pattern.permute.xlu0 0
    %69 = vperm.xlu0 %68, %v55
    %v70 = vpop.permute.xlu0 %69
    %73 = vset.pattern.permute.xlu0 0
    %74 = vperm.xlu0 %73, %v56
    %v75 = vpop.permute.xlu0 %74
    %v81 = vunpack.c.l.b16 %v33
    %v82 = vunpack.c.l.b16 %v34
    %v83 = vunpack.c.l.b16 %v35
    %v84 = vunpack.c.l.b16 %v36
    %v85 = vpack.c.b16 %v82, %v81
    %v86 = vpack.c.b16 %v84, %v83
    %v103 = vunpack.c.l.b16 %v37
    %v104 = vunpack.c.l.b16 %v38
    %v105 = vunpack.c.l.b16 %v39
    %v106 = vunpack.c.l.b16 %v40
    %v107 = vunpack.c.l.b16 %v41
    %v108 = vunpack.c.l.b16 %v42
    %v109 = vunpack.c.l.b16 %v43
    %v110 = vunpack.c.l.b16 %v44
    %v111 = vunpack.c.l.b16 %v45
    %v112 = vunpack.c.l.b16 %v46
    %v113 = vunpack.c.l.b16 %v47
    %v114 = vunpack.c.l.b16 %v48
    %v115 = vunpack.c.l.b16 %v49
    %v116 = vunpack.c.l.b16 %v50
    %v117 = vunpack.c.l.b16 %v51
    %v118 = vunpack.c.l.b16 %v52
    %v119 = vpack.c.b16 %v104, %v103
    %v120 = vpack.c.b16 %v106, %v105
    %v121 = vpack.c.b16 %v108, %v107
    %v122 = vpack.c.b16 %v110, %v109
    %v123 = vpack.c.b16 %v112, %v111
    %v124 = vpack.c.b16 %v114, %v113
    %v125 = vpack.c.b16 %v116, %v115
    %v126 = vpack.c.b16 %v118, %v117
    %vm127 = vcmask 261120
    %v129 = vsel %vm127, %v85, 0
    %v132 = vsel %vm127, %v86, 0
    %v135 = vsel %vm127, %v119, 0
    %v138 = vsel %vm127, %v120, 0
    %v141 = vsel %vm127, %v121, 0
    %v144 = vsel %vm127, %v122, 0
    %v147 = vsel %vm127, %v123, 0
    %v150 = vsel %vm127, %v124, 0
    %v153 = vsel %vm127, %v125, 0
    %v156 = vsel %vm127, %v126, 0
    %158 = vmatprep.subr.bf16.mxu0 0
    %159 = vmatpush1.bf16.xpose.msra.mxu0 %v135
    %160 = vmatprep.subr.bf16.mxu0 0
    %161 = vmatpush1.bf16.xpose.msra.mxu0 %v138
    %162 = vmatprep.subr.bf16.mxu0 0
    %163 = vmatpush1.bf16.xpose.msra.mxu0 %v141
    %164 = vmatprep.subr.bf16.mxu0 0
    %165 = vmatpush1.bf16.xpose.msra.mxu0 %v144
    %166 = vmatprep.subr.bf16.mxu0 0
    %167 = vmatpush1.bf16.xpose.msra.mxu0 %v147
    %168 = vmatprep.subr.bf16.mxu0 0
    %169 = vmatpush1.bf16.xpose.msra.mxu0 %v150
    %170 = vmatprep.subr.bf16.mxu0 0
    %171 = vmatpush1.bf16.xpose.msra.mxu0 %v153
    %172 = vmatprep.subr.bf16.mxu0 0
    %173 = vmatpush1.bf16.xpose.msra.mxu0 %v156
    %174 = vmatprep.subr.bf16.mxu0 0
    %175 = vmatpush1.bf16.xpose.msra.mxu0 0
    %176 = vmatprep.subr.bf16.mxu0 0
    %177 = vmatpush1.bf16.xpose.msra.mxu0 0
    %178 = vmatprep.subr.bf16.mxu0 0
    %179 = vmatpush1.bf16.xpose.msra.mxu0 0
    %180 = vmatprep.subr.bf16.mxu0 0
    %181 = vmatpush1.bf16.xpose.msra.mxu0 0
    %182 = vmatprep.subr.bf16.mxu0 0
    %183 = vmatpush1.bf16.xpose.msra.mxu0 0
    %184 = vmatprep.subr.bf16.mxu0 0
    %185 = vmatpush1.bf16.xpose.msra.mxu0 0
    %186 = vmatprep.subr.bf16.mxu0 0
    %187 = vmatpush1.bf16.xpose.msra.mxu0 0
    %188 = vmatprep.subr.bf16.mxu0 0
    %189 = vmatpush1.bf16.xpose.msra.mxu0 0
    %190 = vmatprep.mubr.bf16.mxu0 0
    %191 = vmatmul.mubr.bf16.gmra.mrb[0].mxu0 %v129
    %v192 = vpop.f32.mrb[0].mxu0
    %v193 = vadd.f32 %v60, %v192
    %v194 = vpop.f32.mrb[0].mxu0
    %v195 = vpop.f32.mrb[0].mxu0
    %v196 = vadd.f32 %v65, %v195
    %v197 = vpop.f32.mrb[0].mxu0
    %198 = vmatprep.mubr.bf16.mxu0 0
    %199 = vmatmul.mubr.bf16.gmra.mrb[0].mxu0 %v132
    %v200 = vpop.f32.mrb[0].mxu0
    %v201 = vadd.f32 %v70, %v200
    %v202 = vpop.f32.mrb[0].mxu0
    %v203 = vpop.f32.mrb[0].mxu0
    %v204 = vadd.f32 %v75, %v203
    %v205 = vpop.f32.mrb[0].mxu0
    %206 = vdwg.mxu0
    %v207 = vtanh.pop %v193
    %v208 = vtanh.pop %v196
    %v209 = vtanh.pop %v201
    %v210 = vtanh.pop %v204
    %s211 = sld [smem:[#allocation2]]
    %v212 = vld [vmem:[%s3] sm:$0xff]
    %v213 = vld [vmem:[%s3 + $0x8] sm:$0xff]
    %v214 = vld [vmem:[%s3 + $0x10] sm:$0xff]
    %v215 = vld [vmem:[%s3 + $0x18] sm:$0xff]
    %217 = vset.pattern.permute.xlu0 0
    %218 = vperm.xlu0 %217, %v212
    %v219 = vpop.permute.xlu0 %218
    %222 = vset.pattern.permute.xlu0 0
    %223 = vperm.xlu0 %222, %v213
    %v224 = vpop.permute.xlu0 %223
    %227 = vset.pattern.permute.xlu0 0
    %228 = vperm.xlu0 %227, %v214
    %v229 = vpop.permute.xlu0 %228
    %232 = vset.pattern.permute.xlu0 0
    %233 = vperm.xlu0 %232, %v215
    %v234 = vpop.permute.xlu0 %233
    %v236 = vmul.f32 %v207, %v219
    %v237 = vmul.f32 %v208, %v224
    %v238 = vmul.f32 %v209, %v229
    %v239 = vmul.f32 %v210, %v234
    %v240 = vadd.f32 %v236, %v237
    %v241 = vadd.f32 %v240, %v238
    %v242 = vadd.f32 %v241, %v239
    %v243 = vrot.slane %v242, 4
    %v244 = vadd.f32 %v242, %v243
    %v245 = vrot.slane %v244, 2
    %v246 = vadd.f32 %v244, %v245
    %v247 = vrot.slane %v246, 1
    %v248 = vadd.f32 %v246, %v247
    %v249 = vstv %s211
    %v250 = vadd.f32 %v248, %v249
    %v251 = vld [vmem:[%s5] sm:$0x1]
    %v252 = vmax.f32 %v250, 0.0
    %v253 = vmul.f32 %v250, %v251
    %v254 = vsub.f32 %v252, %v253
    %v255 = vand.u32 2147483647, %v250
    %v256 = vsub.f32 0.0, %v255
    %v257 = vmul.f32 %v256, 1.442695
    %v258 = vpow.pop %v257
    %v259 = vadd.f32 %v258, 1.0
    %v260 = vlog2.pop %v259
    %v261 = vmul.f32 %v260, 0.6931472
    %v262 = vmul.f32 -0.5, %v258
    %v263 = vadd.f32 %v262, 1.0
    %v264 = vmul.f32 %v263, %v258
    %v265 = vand.u32 2147483647, %v258
    %vm266 = vcmp.lt.f32.partialorder %v265, 0.0004427343
    %v267 = vsel %vm266, %v264, %v261
    %v268 = vadd.f32 %v254, %v267
    %v269 = vsub.f32 0.0, %v250
    %v270 = vmul.f32 %v269, 1.442695
    %v271 = vpow.pop %v270
    %v272 = vadd.f32 %v271, 1.0
    %v273 = vrcp.pop %v272
    %vm274 = vcmp.eq.f32.partialorder %v251, 0.0
    %v275 = vsel %vm274, 1, 0
    %v276 = vcvt.s32.f32 %v275
    %vm277 = vcmp.eq.f32.partialorder %v251, 1.0
    %v278 = vsel %vm277, 1, 0
    %v279 = vcvt.s32.f32 %v278
    %v280 = vmul.f32 %v273, 1.442695
    %v281 = vpow.pop %v280
    %v282 = vmul.f32 %v281, %v276
    %v283 = vsub.f32 0.0, %v273
    %v284 = vmul.f32 %v283, 1.442695
    %v285 = vpow.pop %v284
    %v286 = vmul.f32 %v285, %v279
    %v287 = vlaneseq
    %v288 = vshrl.u32 %v287, 7
    %vm289 = vcmp.eq.s32.totalorder %v288, 0
    %v291 = vlaneseq
    %v292 = vshrl.u32 %v291, 7
    %v293 = vsub.s32 0, %v292
    %v294 = vrot.slane %v276, %v293
    %v296 = vsel %vm289, %v294, 0.0
    %vm297 = vcmp.eq.s32.totalorder %v288, 1
    %v299 = vlaneseq
    %v300 = vshrl.u32 %v299, 7
    %v301 = vsub.s32 0, %v300
    %v302 = vrot.slane %v279, %v301
    %v304 = vsel %vm297, %v302, 0.0
    %v305 = vadd.f32 %v296, %v304
    %vm306 = vcmp.eq.s32.totalorder %v288, 2
    %v307 = vlaneseq
    %v308 = vshrl.u32 %v307, 7
    %v309 = vsub.s32 0, %v308
    %v310 = vrot.slane %v282, %v309
    %v311 = vsel %vm306, %v310, 0.0
    %v312 = vadd.f32 %v305, %v311
    %vm313 = vcmp.eq.s32.totalorder %v288, 3
    %v314 = vlaneseq
    %v315 = vshrl.u32 %v314, 7
    %v316 = vsub.s32 0, %v315
    %v317 = vrot.slane %v286, %v316
    %v318 = vsel %vm313, %v317, 0.0
    %v319 = vadd.f32 %v312, %v318
    %vm320 = vcmp.eq.s32.totalorder %v288, 4
    %v321 = vlaneseq
    %v322 = vshrl.u32 %v321, 7
    %v323 = vsub.s32 0, %v322
    %v324 = vrot.slane %v268, %v323
    %v325 = vsel %vm320, %v324, 0.0
    %v326 = vadd.f32 %v319, %v325
    %v327 = vld [vmem:[%s6] sm:$0xff]
    %v328 = vld [vmem:[%s6 + $0x8] sm:$0xff]
    %v329 = vld [vmem:[%s6 + $0x10] sm:$0xff]
    %v330 = vld [vmem:[%s6 + $0x18] sm:$0xff]
    %v331 = vld [vmem:[%s6 + $0x20] sm:$0xff]
    %v332 = vld [vmem:[%s6 + $0x28] sm:$0xff]
    %v333 = vld [vmem:[%s6 + $0x30] sm:$0xff]
    %v334 = vld [vmem:[%s6 + $0x38] sm:$0xff]
    %v335 = vld [vmem:[%s6 + $0x40] sm:$0xff]
    %v336 = vld [vmem:[%s6 + $0x48] sm:$0xff]
    %v337 = vld [vmem:[%s6 + $0x50] sm:$0xff]
    %v338 = vld [vmem:[%s6 + $0x58] sm:$0xff]
    %v339 = vld [vmem:[%s6 + $0x60] sm:$0xff]
    %v340 = vld [vmem:[%s6 + $0x68] sm:$0xff]
    %v341 = vld [vmem:[%s6 + $0x70] sm:$0xff]
    %v342 = vld [vmem:[%s6 + $0x78] sm:$0xff]
    %343 = vmatprep.subr.mxu0 0.0
    %344 = vmatpush1.msra.mxu0 %v327
    %345 = vmatprep.subr.mxu0 0.0
    %346 = vmatpush1.msra.mxu0 %v328
    %347 = vmatprep.subr.mxu0 0.0
    %348 = vmatpush1.msra.mxu0 %v329
    %349 = vmatprep.subr.mxu0 0.0
    %350 = vmatpush1.msra.mxu0 %v330
    %351 = vmatprep.subr.mxu0 0.0
    %352 = vmatpush1.msra.mxu0 %v331
    %353 = vmatprep.subr.mxu0 0.0
    %354 = vmatpush1.msra.mxu0 %v332
    %355 = vmatprep.subr.mxu0 0.0
    %356 = vmatpush1.msra.mxu0 %v333
    %357 = vmatprep.subr.mxu0 0.0
    %358 = vmatpush1.msra.mxu0 %v334
    %359 = vmatprep.subr.mxu0 0.0
    %360 = vmatpush1.msra.mxu0 %v335
    %361 = vmatprep.subr.mxu0 0.0
    %362 = vmatpush1.msra.mxu0 %v336
    %363 = vmatprep.subr.mxu0 0.0
    %364 = vmatpush1.msra.mxu0 %v337
    %365 = vmatprep.subr.mxu0 0.0
    %366 = vmatpush1.msra.mxu0 %v338
    %367 = vmatprep.subr.mxu0 0.0
    %368 = vmatpush1.msra.mxu0 %v339
    %369 = vmatprep.subr.mxu0 0.0
    %370 = vmatpush1.msra.mxu0 %v340
    %371 = vmatprep.subr.mxu0 0.0
    %372 = vmatpush1.msra.mxu0 %v341
    %373 = vmatprep.subr.mxu0 0.0
    %374 = vmatpush1.msra.mxu0 %v342
    %375 = vmatprep.subr.mxu0 0.0
    %376 = vmatpush1.msra.mxu0 0.0
    %377 = vmatprep.subr.mxu0 0.0
    %378 = vmatpush1.msra.mxu0 0.0
    %379 = vmatprep.subr.mxu0 0.0
    %380 = vmatpush1.msra.mxu0 0.0
    %381 = vmatprep.subr.mxu0 0.0
    %382 = vmatpush1.msra.mxu0 0.0
    %383 = vmatprep.subr.mxu0 0.0
    %384 = vmatpush1.msra.mxu0 0.0
    %385 = vmatprep.subr.mxu0 0.0
    %386 = vmatpush1.msra.mxu0 0.0
    %387 = vmatprep.subr.mxu0 0.0
    %388 = vmatpush1.msra.mxu0 0.0
    %389 = vmatprep.subr.mxu0 0.0
    %390 = vmatpush1.msra.mxu0 0.0
    %391 = vmatprep.subr.mxu0 0.0
    %392 = vmatpush1.msra.mxu0 0.0
    %393 = vmatprep.subr.mxu0 0.0
    %394 = vmatpush1.msra.mxu0 0.0
    %395 = vmatprep.subr.mxu0 0.0
    %396 = vmatpush1.msra.mxu0 0.0
    %397 = vmatprep.subr.mxu0 0.0
    %398 = vmatpush1.msra.mxu0 0.0
    %399 = vmatprep.subr.mxu0 0.0
    %400 = vmatpush1.msra.mxu0 0.0
    %401 = vmatprep.subr.mxu0 0.0
    %402 = vmatpush1.msra.mxu0 0.0
    %403 = vmatprep.subr.mxu0 0.0
    %404 = vmatpush1.msra.mxu0 0.0
    %405 = vmatprep.subr.mxu0 0.0
    %406 = vmatpush1.msra.mxu0 0.0
    %407 = vmatprep.mubr.f32.mxu0 0.0
    %408 = vmatmul.mubr.f32.gmra.mrb[0].mxu0 %v326
    %v409 = vpop.f32.mrb[0].mxu0
    %v410 = vadd.f32 0.0, %v409
    %v411 = vpop.f32.mrb[0].mxu0
    %412 = vdwg.mxu0
    %v414 = vrot.slane %v410, 1
    %v416 = vmul.f32 %v410, %v414
    %vm417 = vcmp.gt.f32.partialorder %v416, 0.0
    %v418 = vmax.f32 %v416, 1.0
    %v420 = vrot.slane %v418, 6
    %v422 = vrcp.pop %v420
    %v423 = vmul.f32 %v416, %v422
    %v425 = vrot.slane %v423, 2
    %v427 = vsel %vm417, %v425, 0.0
    %vm428 = vcmask 1040384
    %v429 = vsel %vm428, %v427, 0.0
    %430 = vadd.xlane.f32.xlu0 %v429
    %v431 = vpop.xlane.xlu0 %430
    %v432 = vmul.f32 %v431, 0.5
    %vm433 = vcmask 1044484
    %v434 = vsel %vm433, %v410, 0.0
    %435 = vadd.xlane.f32.xlu0 %v434
    %v436 = vpop.xlane.xlu0 %435
    %v437 = vmul.f32 %v436, 0.0625
    %v438 = vmul.f32 %v437, 0.8
    %v439 = vmul.f32 %v432, 0.2
    %v441 = vrot.slane %v439, 4
    %v443 = vadd.f32 %v438, %v441
    %vm444 = vcmask 4100
    %445 = vst.msk [vmem:[#allocation3 - $0x4] sm:$0x10] %vm444, %v443
    %446 = vst [vmem:[#allocation5] sm:$0x1] %v250
    %vm447 = vcmp.gt.f32.partialorder %v250, 0.0
    %v448 = vsel %vm447, 1, 0
    %v449 = vcvt.s32.f32 %v448
    %450 = vst [vmem:[#allocation7] sm:$0x1] %v449
    // Predicated region
    $region30: #{tpu_custom_call.1} parent=1 // pred_check
      _
    $region31: #{tpu_custom_call.1} parent=1 // pred_check_branch
      %452 = sbr.rel (0) target = $region33
    $region32: #{tpu_custom_call.1} parent=1 // pred_region
      %s454 = ssub.s32 16, 16
      %455 = vsyncadd [#allocation4], %s454
      %s457 = sshll.u32 [#allocation3], 4
      %s458 = int_to_ptr.vmem [resolvable:$true] %s457
      %460 = dma.vmem_to_hbm [thread:$0]  %s458, 16, %s7, [#allocation4]
    $region33: #{tpu_custom_call.1} parent=1 // pred_fallthru
      _
    // Predicated region
    $region34: #{tpu_custom_call.1} parent=1 // pred_check
      _
    $region35: #{tpu_custom_call.1} parent=1 // pred_check_branch
      %462 = sbr.rel (0) target = $region37
    $region36: #{tpu_custom_call.1} parent=1 // pred_region
      %s464 = ssub.s32 16, 16
      %465 = vsyncadd [#allocation6], %s464
      %s467 = sshll.u32 [#allocation5], 4
      %s468 = int_to_ptr.vmem [resolvable:$true] %s467
      %470 = dma.vmem_to_hbm [thread:$0]  %s468, 16, %s8, [#allocation6]
    $region37: #{tpu_custom_call.1} parent=1 // pred_fallthru
      _
    // Predicated region
    $region38: #{tpu_custom_call.1} parent=1 // pred_check
      _
    $region39: #{tpu_custom_call.1} parent=1 // pred_check_branch
      %472 = sbr.rel (0) target = $region41
    $region40: #{tpu_custom_call.1} parent=1 // pred_region
      %s474 = ssub.s32 16, 16
      %475 = vsyncadd [#allocation6], %s474
      %s477 = sshll.u32 [#allocation7], 4
      %s478 = int_to_ptr.vmem [resolvable:$true] %s477
      %480 = dma.vmem_to_hbm [thread:$0]  %s478, 16, %s9, [#allocation6]
    $region41: #{tpu_custom_call.1} parent=1 // pred_fallthru
      _
    // Predicated region
    $region42: #{tpu_custom_call.1} parent=1 // pred_check
      _
    $region43: #{tpu_custom_call.1} parent=1 // pred_check_branch
      %482 = sbr.rel (0) target = $region45
    $region44: #{tpu_custom_call.1} parent=1 // pred_region
      %483 = dma.done [#allocation4], 16
    $region45: #{tpu_custom_call.1} parent=1 // pred_fallthru
      _
    // Predicated region
    $region46: #{tpu_custom_call.1} parent=1 // pred_check
      _
    $region47: #{tpu_custom_call.1} parent=1 // pred_check_branch
      %485 = sbr.rel (0) target = $region49
    $region48: #{tpu_custom_call.1} parent=1 // pred_region
      %486 = dma.done [#allocation6], 16
    $region49: #{tpu_custom_call.1} parent=1 // pred_fallthru
      _
    // Predicated region
    $region50: #{tpu_custom_call.1} parent=1 // pred_check
      _
    $region51: #{tpu_custom_call.1} parent=1 // pred_check_branch
      %488 = sbr.rel (0) target = $region53
    $region52: #{tpu_custom_call.1} parent=1 // pred_region
      %489 = dma.done [#allocation6], 16
    $region53: #{tpu_custom_call.1} parent=1 // pred_fallthru
      _
    %490 = vsyncpa [#allocation4], 1
    %491 = vsyncpa [#allocation6], 1

</llo_original>
